<compile_context>
chip_gen: v7x
topology: tpu7x:2x2x1
jax: 0.10.0
libtpu: 0.0.40
codegen_flags: <defaults>
</compile_context>

<pallas_src>
import functools

import jax
import jax.numpy as jnp
from jax.experimental import pallas as pl
from jax.experimental.pallas import tpu as pltpu


# ---------------------------------------------------------------------------
# Generation-aware budgets.
# ---------------------------------------------------------------------------
@functools.lru_cache(maxsize=1)
def _budgets():
    """Returns (vmem_limit_bytes, one_pass_max_block_bytes, two_pass_tile_bytes)."""
    vmem_cap = None
    try:
        info = pltpu.get_tpu_info()
        vmem_cap = int(getattr(info, "vmem_capacity_bytes", 0)) or None
    except Exception:
        vmem_cap = None
    if vmem_cap is None:
        vmem_cap = 64 * 1024 * 1024          # conservative: v7x per-TC VMEM
    # Scoped VMEM limit: ~3/4 of physical, capped at 100 MiB.
    vmem_limit = min(100 * 1024 * 1024, (vmem_cap * 3) // 4)
    # One-pass per-step footprint ~= 4x block (in + out, each double-buffered).
    one_pass_max = vmem_limit // 5
    # Two-pass gate per-step footprint ~= 4x tile; cap at 8 MiB (v5e/v6e are
    # already >90% efficient there, v7x lands at ~6 MiB).
    two_pass_tile = min(8 * 1024 * 1024, vmem_limit // 8)
    return vmem_limit, one_pass_max, two_pass_tile


def _lane_chunk(C):
    """Lane-chunk size (multiple of 128) keeping the f32 working set ~<=512 KiB."""
    lanes = ((512 * 1024) // max(C * 4, 1)) // 128 * 128
    return int(min(max(lanes, 128), 4096))


# ---------------------------------------------------------------------------
# In-kernel helpers (static lane-chunked loops: bounded live f32 working set,
# bounded code size, no dynamic lane offsets).
# ---------------------------------------------------------------------------
def _chunked_lane_sum_f32(x_ref, chunk, mask_base=None, hw=None):
    """Sum a (1, C, L) ref over the lane axis in f32, `chunk` lanes at a time.

    If mask_base is not None, lanes whose global index (mask_base + local)
    is >= hw are zeroed (ragged boundary tile of a cdiv grid).
    """
    C, L = x_ref.shape[1], x_ref.shape[2]
    acc = jnp.zeros((1, C), jnp.float32)
    for start in range(0, L, chunk):
        size = min(chunk, L - start)
        xs = x_ref[:, :, start:start + size].astype(jnp.float32)   # (1, C, size)
        if mask_base is not None:
            lane = jax.lax.broadcasted_iota(jnp.int32, xs.shape, 2)
            xs = jnp.where(mask_base + start + lane < hw, xs, 0.0)
        acc = acc + jnp.sum(xs, axis=-1)                            # (1, C)
    return acc


def _chunked_gate_store(x_ref, o_ref, scale, chunk):
    """o[:, :, l] = x[:, :, l] * scale, chunked over the lane axis."""
    L = x_ref.shape[2]
    for start in range(0, L, chunk):
        size = min(chunk, L - start)
        sl = slice(start, start + size)
        o_ref[:, :, sl] = (x_ref[:, :, sl] * scale).astype(o_ref.dtype)


# ---------------------------------------------------------------------------
# One-pass kernel: whole (1, C, H*W) per-batch block resident in VMEM.
# ---------------------------------------------------------------------------
def _eca_one_pass_kernel(w_ref, x_ref, o_ref, *, k_size, inv_hw, chunk):
    # w_ref: (k_size,) f32 conv taps, scalar-prefetched into SMEM.
    # x_ref / o_ref: (1, C, H*W) blocks; H*W on lanes (dense), C on sublanes.
    C = x_ref.shape[1]

    # Global average pool, f32 accumulation, chunked over the lane axis so a
    # full-block f32 copy is never materialized (no vreg spills).
    y = _chunked_lane_sum_f32(x_ref, chunk) * inv_hw                 # (1, C)

    # Zero-padded k-tap conv across the channel axis (tiny; plain slices).
    pad = (k_size - 1) // 2
    if pad > 0:
        zeros = jnp.zeros((1, pad), jnp.float32)
        ypad = jnp.concatenate([zeros, y, zeros], axis=1)            # (1, C+2p)
    else:
        ypad = y
    acc = jnp.zeros_like(y)
    for j in range(k_size):
        acc = acc + w_ref[j] * jax.lax.slice(ypad, (0, j), (1, j + C))

    # Sigmoid gate, broadcast over spatial.  x_ref is re-read chunk by chunk
    # instead of keeping a full copy of the block live.
    scale = jax.nn.sigmoid(acc)[:, :, None].astype(x_ref.dtype)     # (1, C, 1)
    _chunked_gate_store(x_ref, o_ref, scale, chunk)


def _eca_one_pass(x3, w, k_size, vmem_limit, alias_input):
    B, C, HW = x3.shape
    itemsize = x3.dtype.itemsize
    kernel = functools.partial(_eca_one_pass_kernel, k_size=k_size,
                               inv_hw=1.0 / HW, chunk=_lane_chunk(C))
    grid_spec = pltpu.PrefetchScalarGridSpec(
        num_scalar_prefetch=1,                     # conv taps -> SMEM
        grid=(B,),
        in_specs=[pl.BlockSpec((1, C, HW), lambda b, w_ref: (b, 0, 0))],
        out_specs=pl.BlockSpec((1, C, HW), lambda b, w_ref: (b, 0, 0)),
    )
    # Purely HBM-bandwidth bound: read x once, write out once.
    cost = pl.CostEstimate(flops=3 * B * C * HW,
                           transcendentals=B * C,
                           bytes_accessed=2 * B * C * HW * itemsize)
    return pl.pallas_call(
        kernel,
        out_shape=jax.ShapeDtypeStruct(x3.shape, x3.dtype),
        grid_spec=grid_spec,
        compiler_params=pltpu.CompilerParams(
            dimension_semantics=("parallel",),
            vmem_limit_bytes=vmem_limit),
        cost_estimate=cost,
        input_output_aliases=({1: 0} if alias_input else {}),
    )(w, x3)


# ---------------------------------------------------------------------------
# Two-pass path for large activations: pooled sums, JAX conv+sigmoid, gate.
# ---------------------------------------------------------------------------
def _pool_sum_kernel(x_ref, sum_ref, *, hw, ts, chunk, needs_mask):
    # x_ref: (1, C, ts); sum_ref: (1, C, 1) f32 accumulator, resident across
    # the spatial ("arbitrary") grid axis.
    s = pl.program_id(1)

    @pl.when(s == 0)
    def _():
        sum_ref[...] = jnp.zeros_like(sum_ref)

    base = (s * ts) if needs_mask else None      # mask only if HW % ts != 0
    part = _chunked_lane_sum_f32(x_ref, chunk, mask_base=base, hw=hw)  # (1, C)
    sum_ref[...] += part[:, :, None]


def _gate_kernel(scale_ref, x_ref, o_ref, *, chunk):
    # scale_ref: (1, C, 1) f32; x_ref / o_ref: (1, C, ts).  Out-of-bounds
    # lanes of the ragged boundary tile are dropped by Pallas on store.
    scale = scale_ref[...].astype(x_ref.dtype)
    _chunked_gate_store(x_ref, o_ref, scale, chunk)


def _eca_two_pass(x3, w, k_size, tile_bytes, vmem_limit, alias_input):
    B, C, HW = x3.shape
    itemsize = x3.dtype.itemsize
    chunk = _lane_chunk(C)

    # Lane tile: multiple of 128 (or the full spatial extent when it fits),
    # sized to the per-step tile budget.  No wrapper-side padding: the ragged
    # tail tile is masked inside the pooling kernel and out-of-bounds stores
    # of the gate pass are dropped by Pallas.
    max_ts = max(128, (tile_bytes // max(C * itemsize, 1)) // 128 * 128)
    if HW <= max_ts:
        ts, n_tiles = HW, 1
    else:
        ts = max_ts
        n_tiles = pl.cdiv(HW, ts)
    needs_mask = (n_tiles * ts != HW)
    # TODO(synk): also tile the channel axis when (1, C, 128) alone exceeds the
    # tile budget (extreme C); the JAX-side conv needs no halo so it is cheap.

    # Pass 1: per-(B, C) spatial sums.
    sums = pl.pallas_call(
        functools.partial(_pool_sum_kernel, hw=HW, ts=ts, chunk=chunk,
                          needs_mask=needs_mask),
        out_shape=jax.ShapeDtypeStruct((B, C, 1), jnp.float32),
        grid_spec=pltpu.PrefetchScalarGridSpec(
            num_scalar_prefetch=0,
            grid=(B, n_tiles),
            in_specs=[pl.BlockSpec((1, C, ts), lambda b, s: (b, 0, s))],
            out_specs=pl.BlockSpec((1, C, 1), lambda b, s: (b, 0, 0)),
        ),
        compiler_params=pltpu.CompilerParams(
            dimension_semantics=("parallel", "arbitrary"),
            vmem_limit_bytes=vmem_limit),
        cost_estimate=pl.CostEstimate(
            flops=B * C * HW, transcendentals=0,
            bytes_accessed=B * C * HW * itemsize + B * C * 4),
    )(x3)

    # Tiny k-tap channel conv + sigmoid on the (B, C) pooled means: plain JAX.
    y = sums[:, :, 0] * (1.0 / HW)                                   # (B, C)
    pad = (k_size - 1) // 2
    ypad = jnp.pad(y, ((0, 0), (pad, pad)))
    conv = sum(w[j] * ypad[:, j:j + C] for j in range(k_size))
    scale3 = jax.nn.sigmoid(conv)[:, :, None]                        # (B, C, 1)

    # Pass 2: gate.  Fully parallel grid (feeds both v7x TensorCores).
    return pl.pallas_call(
        functools.partial(_gate_kernel, chunk=chunk),
        out_shape=jax.ShapeDtypeStruct(x3.shape, x3.dtype),
        grid_spec=pltpu.PrefetchScalarGridSpec(
            num_scalar_prefetch=0,
            grid=(B, n_tiles),
            in_specs=[pl.BlockSpec((1, C, 1), lambda b, s: (b, 0, 0)),
                      pl.BlockSpec((1, C, ts), lambda b, s: (b, 0, s))],
            out_specs=pl.BlockSpec((1, C, ts), lambda b, s: (b, 0, s)),
        ),
        compiler_params=pltpu.CompilerParams(
            dimension_semantics=("parallel", "parallel"),
            vmem_limit_bytes=vmem_limit),
        cost_estimate=pl.CostEstimate(
            flops=B * C * HW, transcendentals=0,
            bytes_accessed=2 * B * C * HW * itemsize + B * C * 4),
        input_output_aliases=({1: 0} if alias_input else {}),
    )(scale3, x3)


# ---------------------------------------------------------------------------
# Public wrapper.
# ---------------------------------------------------------------------------
def eca_forward(x, w, *, one_pass_max_bytes=None, two_pass_tile_bytes=None,
                alias_input=False):
    """x: (B, C, H, W); w: (k_size,) Conv1d weights (flattened from (1,1,k))."""
    B, C, H, W = x.shape
    HW = H * W
    k_size = int(w.shape[0])
    wf = w.astype(jnp.float32)

    vmem_limit, auto_one_pass, auto_tile = _budgets()
    if one_pass_max_bytes is None:
        one_pass_max_bytes = auto_one_pass
    if two_pass_tile_bytes is None:
        two_pass_tile_bytes = auto_tile

    # Lane-dense layout: flatten spatial dims so H*W is the lane axis and C
    # the sublane axis (free reshape for contiguous NCHW).
    x3 = x.reshape(B, C, HW)

    block_bytes = C * HW * x.dtype.itemsize
    # One-pass (2x HBM traffic) when the per-batch block fits the VMEM budget
    # and there are >= 2 grid steps (cross-step pipelining, both v7x TCs busy);
    # tiny single-batch tensors still go one-pass (launch overhead dominates).
    use_one_pass = (block_bytes <= one_pass_max_bytes and
                    (B >= 2 or block_bytes <= (1 << 20)))
    if use_one_pass:
        out3 = _eca_one_pass(x3, wf, k_size, vmem_limit, alias_input)
    else:
        out3 = _eca_two_pass(x3, wf, k_size, two_pass_tile_bytes, vmem_limit,
                             alias_input)
    return out3.reshape(B, C, H, W)


def eca_reference(x, w):
    """Pure-JAX reference of the PyTorch forward (for correctness checks)."""
    k = w.shape[0]
    pad = (k - 1) // 2
    y = jnp.mean(x.astype(jnp.float32), axis=(2, 3))                  # (B, C)
    ypad = jnp.pad(y, ((0, 0), (pad, pad)))
    conv = sum(w[j] * ypad[:, j:j + y.shape[1]] for j in range(k))
    s = jax.nn.sigmoid(conv)
    return (x.astype(jnp.float32) * s[:, :, None, None]).astype(x.dtype)


if __name__ == "__main__":
    key = jax.random.PRNGKey(0)
    kx, kw, kx2 = jax.random.split(key, 3)

    k_size = 3
    # Deterministic Conv1d(1, 1, k_size, bias=False) weight init
    # (PyTorch default: uniform in [-1/sqrt(k), 1/sqrt(k)]).
    bound = 1.0 / (k_size ** 0.5)
    w = jax.random.uniform(kw, (k_size,), minval=-bound, maxval=bound,
                           dtype=jnp.float32)

    # Default routing -> one-pass kernel (whole per-batch block in VMEM).
    B, C, H, W = 2, 4, 16, 16
    x = jax.random.normal(kx, (B, C, H, W), dtype=jnp.float32)
    ref = eca_reference(x, w)
    out1 = jax.block_until_ready(eca_forward(x, w))
    assert out1.shape == x.shape and out1.dtype == x.dtype
    assert jnp.max(jnp.abs(out1 - ref)) < 1e-5

    # Force the large-activation two-pass path with a tiny tile budget so the
    # spatial axis is really tiled; H*W = 300 makes the last tile ragged,
    # exercising the in-kernel tail mask (no wrapper-side padding anymore).
    x2 = jax.random.normal(kx2, (2, 8, 15, 20), dtype=jnp.float32)
    ref2 = eca_reference(x2, w)
    out2 = jax.block_until_ready(
        eca_forward(x2, w, one_pass_max_bytes=0, two_pass_tile_bytes=2048))
    assert out2.shape == x2.shape and out2.dtype == x2.dtype
    assert jnp.max(jnp.abs(out2 - ref2)) < 1e-5

    print("KERNEL_OK")
</pallas_src>

<mosaic_0001>
module attributes {stable_mosaic.version = 11 : i64} {
  func.func @_eca_one_pass_kernel(%arg0: i32, %arg1: memref<3xf32, #tpu.memory_space<smem>>, %arg2: memref<1x4x256xf32, #tpu.memory_space<vmem>>, %arg3: memref<1x4x256xf32, #tpu.memory_space<vmem>>) attributes {dimension_semantics = [#tpu.dimension_semantics<parallel>], iteration_bounds = array<i64: 2>, scalar_prefetch = 1 : i64, scratch_operands = 0 : i64, tpu.core_type = #tpu.core_type<tc>, window_params = [{transform_indices = @transform_0, window_bounds = array<i64: 1, 4, 256>}, {transform_indices = @transform_1, window_bounds = array<i64: 1, 4, 256>}]} {
    %cst = arith.constant 0.000000e+00 : f32
    %0 = vector.broadcast %cst : f32 to vector<1x4xf32>
    %c0 = arith.constant 0 : index
    %c0_0 = arith.constant 0 : index
    %c0_1 = arith.constant 0 : index
    %1 = vector.load %arg2[%c0, %c0_0, %c0_1] : memref<1x4x256xf32, #tpu.memory_space<vmem>>, vector<1x4x256xf32>
    %cst_2 = arith.constant dense<0.000000e+00> : vector<1x4xf32>
    %2 = vector.multi_reduction <add>, %1, %cst_2 [2] : vector<1x4x256xf32> to vector<1x4xf32>
    %3 = arith.addf %0, %2 : vector<1x4xf32>
    %cst_3 = arith.constant 3.906250e-03 : f32
    %4 = vector.broadcast %cst_3 : f32 to vector<1x4xf32>
    %5 = arith.mulf %3, %4 : vector<1x4xf32>
    %cst_4 = arith.constant 0.000000e+00 : f32
    %6 = vector.broadcast %cst_4 : f32 to vector<1x1xf32>
    %7 = tpu.concatenate %6, %5, %6 in 1 : vector<1x1xf32>, vector<1x4xf32>, vector<1x1xf32> -> vector<1x6xf32>
    %cst_5 = arith.constant 0.000000e+00 : f32
    %8 = vector.broadcast %cst_5 : f32 to vector<1x4xf32>
    %c0_6 = arith.constant 0 : index
    %9 = memref.load %arg1[%c0_6] : memref<3xf32, #tpu.memory_space<smem>>
    %10 = vector.extract_strided_slice %7 {offsets = [0, 0], sizes = [1, 4], strides = [1, 1]} : vector<1x6xf32> to vector<1x4xf32>
    %11 = vector.broadcast %9 : f32 to vector<1x4xf32>
    %12 = arith.mulf %11, %10 : vector<1x4xf32>
    %13 = arith.addf %8, %12 : vector<1x4xf32>
    %c1 = arith.constant 1 : index
    %14 = memref.load %arg1[%c1] : memref<3xf32, #tpu.memory_space<smem>>
    %15 = vector.extract_strided_slice %7 {offsets = [0, 1], sizes = [1, 4], strides = [1, 1]} : vector<1x6xf32> to vector<1x4xf32>
    %16 = vector.broadcast %14 : f32 to vector<1x4xf32>
    %17 = arith.mulf %16, %15 : vector<1x4xf32>
    %18 = arith.addf %13, %17 : vector<1x4xf32>
    %c2 = arith.constant 2 : index
    %19 = memref.load %arg1[%c2] : memref<3xf32, #tpu.memory_space<smem>>
    %20 = vector.extract_strided_slice %7 {offsets = [0, 2], sizes = [1, 4], strides = [1, 1]} : vector<1x6xf32> to vector<1x4xf32>
    %21 = vector.broadcast %19 : f32 to vector<1x4xf32>
    %22 = arith.mulf %21, %20 : vector<1x4xf32>
    %23 = arith.addf %18, %22 : vector<1x4xf32>
    %24 = arith.negf %23 : vector<1x4xf32>
    %25 = math.exp %24 : vector<1x4xf32>
    %cst_7 = arith.constant 1.000000e+00 : f32
    %26 = vector.broadcast %cst_7 : f32 to vector<1x4xf32>
    %27 = arith.addf %26, %25 : vector<1x4xf32>
    %28 = arith.divf %26, %27 : vector<1x4xf32>
    %29 = vector.shape_cast %28 : vector<1x4xf32> to vector<1x4x1xf32>
    %c0_8 = arith.constant 0 : index
    %c0_9 = arith.constant 0 : index
    %c0_10 = arith.constant 0 : index
    %30 = vector.load %arg2[%c0_8, %c0_9, %c0_10] : memref<1x4x256xf32, #tpu.memory_space<vmem>>, vector<1x4x256xf32>
    %31 = vector.broadcast %29 : vector<1x4x1xf32> to vector<1x4x256xf32>
    %32 = arith.mulf %30, %31 : vector<1x4x256xf32>
    %c0_11 = arith.constant 0 : index
    %c0_12 = arith.constant 0 : index
    %c0_13 = arith.constant 0 : index
    %33 = vector.load %arg3[%c0_11, %c0_12, %c0_13] : memref<1x4x256xf32, #tpu.memory_space<vmem>>, vector<1x4x256xf32>
    tpu.vector_store %arg3[%c0_11, %c0_12, %c0_13], %32 {strides = array<i32>} : memref<1x4x256xf32, #tpu.memory_space<vmem>>, vector<1x4x256xf32>,
    return
  }
  func.func @transform_0(%arg0: i32, %arg1: memref<3xf32, #tpu.memory_space<smem>>) -> (i32, i32, i32) {
    %c0_i32 = arith.constant 0 : i32
    %c0_i32_0 = arith.constant 0 : i32
    %c0_i32_1 = arith.constant 0 : i32
    return %arg0, %c0_i32, %c0_i32_0 : i32, i32, i32
  }
  func.func @transform_1(%arg0: i32, %arg1: memref<3xf32, #tpu.memory_space<smem>>) -> (i32, i32, i32) {
    %c0_i32 = arith.constant 0 : i32
    %c0_i32_0 = arith.constant 0 : i32
    %c0_i32_1 = arith.constant 0 : i32
    return %arg0, %c0_i32, %c0_i32_0 : i32, i32, i32
  }
}

</mosaic_0001>

<llo_original>
// kernel: tpu_custom_call.1
$region0: #{tpu_custom_call.1}
  #allocation0 [shape = 'u32[]', space=smem, size = 0x4, offset = 0x4, fixed_abs, tag = 'smem constant byte address 0x4 - core index']
  #allocation1 [shape = 'u32[144,128]{1,0:T(1,128)}', space=vmem, size = 0x12000, scoped, tag = 'internal scratch']
  #allocation2 [shape = 's32[1]{0}', space=sflag, size = 0x4, scoped, tag = 'scoped memory for tpu_custom_call.1']
  #allocation3 [shape = 'u8[512]{0}', space=smem, size = 0x200, scoped, tag = 'prefetched SMEM operand 0']
  %s0 = inlined_call_operand.hbm [shape: f32[3], index: 0, kind: input, shape index: {}]
  %s1 = inlined_call_operand.hbm [shape: f32[2,4,256], index: 1, kind: input, shape index: {}]
  %s2 = inlined_call_operand.hbm [shape: f32[2,4,256], index: 2, kind: output, shape index: {}]
  %s3 = sld [smem:[#allocation0]]
  $region41: #{tpu_custom_call.1} parent=0
    _
  %s5 = ssub.s32 1, %s3
  %s6 = scalar_select 0, %s5, %s3
  %8 = dma.hbm_to_smem %s0, 16, [#allocation3], [#allocation2]
  %9 = dma.done [#allocation2], 16
  %10 = sfence
  $region1: #{tpu_custom_call.1} parent=0
    #allocation4 [shape = 'u8[8192]{0}', space=vmem, size = 0x2000, scoped, tag = 'input window, operand 1']
    #allocation5 [shape = 's32[2]{0}', space=sflag, size = 0x8, scoped, tag = 'scoped memory for tpu_custom_call.1']
    #allocation6 [shape = 's32[2]{0}', space=sflag, size = 0x8, scoped, tag = 'scoped memory for tpu_custom_call.1']
    #allocation7 [shape = 'u8[8192]{0}', space=vmem, size = 0x2000, scoped, tag = 'output window, operand 0']
    %11 = vsyncpa [#allocation5], 0
    %s12 = scalar_lea.sflag [#allocation5], 1
    %13 = vsyncpa %s12, 0
    %14 = vsyncpa [#allocation6], 0
    %s15 = scalar_lea.sflag [#allocation6], 1
    %16 = vsyncpa %s15, 0
    loop: start=0, step=1, limit=4
    $region2: #{tpu_custom_call.1} parent=1 // loop_pre_header
      _
    $region3: #{tpu_custom_call.1} parent=1 // loop_header
      %s18 = sphi 0, %s22
      %p19 = scmp.ge.s32.totalorder %s18, 4
      %s28 = sphi 0, %s30
      %s31 = sphi 0, %s28
      %s32 = sphi 0, %s31
      %s48 = sphi 0, %s32
      %s54 = sphi 0, %s56
      %s57 = sphi 0, %s54
      %s58 = sphi 0, %s57
      %s74 = sphi 0, %s58
    $region4: #{tpu_custom_call.1} parent=1 // loop_header_branch
      %21 = sbr.rel (%p19) target = $region8
    $region5: #{tpu_custom_call.1} parent=1 // loop_body
      %s23 = ssub.s32 %s18, 1
      %s24 = ssub.s32 %s18, 2
      %s25 = sadd.s32 %s18, 1
      %s26 = ssub.s32 %s18, %s25
      %p27 = scmp.eq.s32.totalorder %s26, 0
      %s29 = sadd.s32 %s28, 1
      %s30 = scalar_select %p27, %s28, %s29
      %p33 = pneg %p27
      %p34 = scmp.eq.s32.totalorder %s18, 1
      %p35 = por %p33, %p34
      %p36 = scmp.ne.s32.totalorder %s28, %s31
      %p37 = scmp.eq.s32.totalorder %s18, 0
      %p38 = por %p36, %p37
      %p39 = scmp.ne.s32.totalorder %s28, %s31
      %p40 = scmp.eq.s32.totalorder %s23, 1
      %p41 = por %p39, %p40
      %p42 = scmp.ne.s32.totalorder %s31, %s32
      %p43 = scmp.eq.s32.totalorder %s23, 0
      %p44 = por %p42, %p43
      %p45 = scmp.ne.s32.totalorder %s31, %s32
      %p46 = scmp.eq.s32.totalorder %s24, 1
      %p47 = por %p45, %p46
      %p49 = scmp.ne.s32.totalorder %s32, %s48
      %p50 = scmp.eq.s32.totalorder %s24, 0
      %p51 = por %p49, %p50
      %s52 = ssub.s32 %s18, %s25
      %p53 = scmp.eq.s32.totalorder %s52, 0
      %s55 = sadd.s32 %s54, 1
      %s56 = scalar_select %p53, %s54, %s55
      %p59 = pneg %p53
      %p60 = scmp.eq.s32.totalorder %s18, 1
      %p61 = por %p59, %p60
      %p62 = scmp.ne.s32.totalorder %s54, %s57
      %p63 = scmp.eq.s32.totalorder %s18, 0
      %p64 = por %p62, %p63
      %p65 = scmp.ne.s32.totalorder %s54, %s57
      %p66 = scmp.eq.s32.totalorder %s23, 1
      %p67 = por %p65, %p66
      %p68 = scmp.ne.s32.totalorder %s57, %s58
      %p69 = scmp.eq.s32.totalorder %s23, 0
      %p70 = por %p68, %p69
      %p71 = scmp.ne.s32.totalorder %s57, %s58
      %p72 = scmp.eq.s32.totalorder %s24, 1
      %p73 = por %p71, %p72
      %p75 = scmp.ne.s32.totalorder %s58, %s74
      %p76 = scmp.eq.s32.totalorder %s24, 0
      %p77 = por %p75, %p76
      %p78 = scmp.le.s32.totalorder 1, %s18
      %p79 = scmp.lt.s32.totalorder %s18, 3
      %p80 = pnand %p78, %p79
      %p81 = pneg %p80
      // Predicated region
      $region9: #{tpu_custom_call.1} parent=5 // pred_check
        _
      $region10: #{tpu_custom_call.1} parent=5 // pred_check_branch
        %83 = sbr.rel (%p80) target = $region12
      $region11: #{tpu_custom_call.1} parent=5 // pred_region
        %s84 = ssub.s32 %s18, 1
      $region12: #{tpu_custom_call.1} parent=5 // pred_fallthru
        _
      %p85 = scmp.lt.s32.totalorder %s18, 2
      // Predicated region
      $region13: #{tpu_custom_call.1} parent=5 // pred_check
        %p86 = pneg %p85
      $region14: #{tpu_custom_call.1} parent=5 // pred_check_branch
        %88 = sbr.rel (%p86) target = $region16
      $region15: #{tpu_custom_call.1} parent=5 // pred_region
        // Predicated region
        $region17: #{tpu_custom_call.1} parent=15 // pred_check
          %p89 = pneg %p38
        $region18: #{tpu_custom_call.1} parent=15 // pred_check_branch
          %91 = sbr.rel (%p89) target = $region20
        $region19: #{tpu_custom_call.1} parent=15 // pred_region
          %s92 = sand.u32 %s28, 1
          %s93 = scalar_lea.sflag [#allocation5], %s92
          %s94 = sand.u32 %s28, 1
          %s95 = smul.addr %s94, 8
          %s96 = scalar_lea.vmem [#allocation4], %s95
          %s98 = ssub.s32 128, 128
          %99 = vsyncadd %s93, %s98
          %s100 = smul.addr %s18, 2
          %s101 = smul.addr %s100, 64
          %s102 = scalar_lea.hbm %s1, %s101
          %s104 = sshll.u32 %s96, 4
          %s105 = int_to_ptr.vmem [resolvable:$true] %s104
          %107 = dma.hbm_to_vmem [thread:$0]  %s102, 128, %s105, %s93
        $region20: #{tpu_custom_call.1} parent=15 // pred_fallthru
          _
      $region16: #{tpu_custom_call.1} parent=5 // pred_fallthru
        _
      %p108 = scmp.le.s32.totalorder 1, %s18
      %p109 = scmp.lt.s32.totalorder %s18, 3
      %p110 = pnand %p108, %p109
      %p111 = pneg %p110
      // Predicated region
      $region21: #{tpu_custom_call.1} parent=5 // pred_check
        _
      $region22: #{tpu_custom_call.1} parent=5 // pred_check_branch
        %113 = sbr.rel (%p110) target = $region24
      $region23: #{tpu_custom_call.1} parent=5 // pred_region
        %s114 = ssub.s32 %s18, 1
        %s115 = sand.u32 %s31, 1
        %s116 = scalar_lea.sflag [#allocation5], %s115
        %s117 = sand.u32 %s31, 1
        %s118 = smul.addr %s117, 8
        %s119 = scalar_lea.vmem [#allocation4], %s118
        // Predicated region
        $region25: #{tpu_custom_call.1} parent=23 // pred_check
          %p120 = pneg %p44
        $region26: #{tpu_custom_call.1} parent=23 // pred_check_branch
          %122 = sbr.rel (%p120) target = $region28
        $region27: #{tpu_custom_call.1} parent=23 // pred_region
          %123 = dma.done %s116, 128
        $region28: #{tpu_custom_call.1} parent=23 // pred_fallthru
          _
        %s124 = sand.u32 %s31, 1
        %s125 = scalar_lea.sflag [#allocation5], %s124
        %s126 = sand.u32 %s31, 1
        %s127 = smul.addr %s126, 8
        %s128 = scalar_lea.vmem [#allocation4], %s127
        %p129 = pneg %p44
        %p130 = pneg %p41
        %p131 = pneg %p70
        %p132 = pneg %p67
        %s133 = sand.u32 %s57, 1
        %s134 = scalar_lea.sflag [#allocation6], %s133
        %s135 = sand.u32 %s57, 1
        %s136 = smul.addr %s135, 8
        %s137 = scalar_lea.vmem [#allocation7], %s136
        %v138 = vld [vmem:[%s119] sm:$0xff]
        %v140 = vcombine.high %v138, %v138
        %vm142 = vcmask 1043456
        %v143 = vsel %vm142, %v138, 0.0
        %v144 = vsel %vm142, %v140, 0.0
        %v145 = vadd.f32 %v143, %v144
        %146 = vadd.xlane.f32.xlu0 %v145
        %v147 = vpop.xlane.xlu0 %146
        %v148 = vadd.f32 %v147, 0.0
        %v149 = vmul.f32 %v148, 0.00390625
        %v151 = vlaneseq
        %v152 = vand.u32 %v151, 127
        %v153 = vadd.s32 %v152, 4294967295
        %v154 = vlaneseq
        %v155 = vshrl.u32 %v154, 7
        %v156 = vsub.s32 %v153, %v155
        %v157 = vrot.slane %v149, %v156
        %vm159 = vcmask 7168
        %v160 = vsel %vm159, 0.0, %v157
        %vm161 = vcmask 39936
        %v162 = vsel %vm161, %v160, 0.0
        %s163 = sld [smem:[#allocation3]]
        %v164 = vstv %s163
        %v165 = vmul.f32 %v164, %v162
        %v166 = vadd.f32 %v165, 0.0
        %s167 = sld [smem:[#allocation3 + $0x1]]
        %v168 = vstv %s167
        %v169 = vmul.f32 %v168, %v162
        %171 = vrot.lane.b32.xlu0 %v169, 127
        %v172 = vpop.permute.xlu0 %171
        %v174 = vadd.f32 %v166, %v172
        %s175 = sld [smem:[#allocation3 + $0x2]]
        %v176 = vstv %s175
        %v177 = vmul.f32 %v176, %v162
        %179 = vrot.lane.b32.xlu0 %v177, 126
        %v180 = vpop.permute.xlu0 %179
        %v182 = vadd.f32 %v174, %v180
        %v183 = vxor.u32 %v182, 2147483648
        %v184 = vmul.f32 %v183, 1.442695
        %v185 = vpow.pop %v184
        %v186 = vadd.f32 %v185, 1.0
        %v187 = vrcp.pop %v186
        %v188 = vmul.f32 1.0, %v187
        %v189 = vlaneseq
        %v190 = vshrl.u32 %v189, 7
        %v191 = vsub.s32 0, %v190
        %v192 = vrot.slane %v188, %v191
        %194 = vbcast.lane.b32.xlu0 %v192, 256
        %v195 = vpop.permute.xlu0 %194
        %v198 = vunpack.c.l.s4 839922192
        %v199 = vunpack.c.0.s8 %v198
        %v200 = vlaneseq
        %v201 = vshrl.u32 %v200, 7
        %v202 = vsub.s32 %v199, %v201
        %v203 = vrot.slane %v195, %v202
        %v205 = vmul.f32 %v138, %v203
        %206 = vst [vmem:[%s137] sm:$0xff] %v205
        %s207 = sand.u32 %s57, 1
        %s208 = scalar_lea.sflag [#allocation6], %s207
        %s209 = sand.u32 %s57, 1
        %s210 = smul.addr %s209, 8
        %s211 = scalar_lea.vmem [#allocation7], %s210
        // Predicated region
        $region29: #{tpu_custom_call.1} parent=23 // pred_check
          %p212 = pneg %p67
        $region30: #{tpu_custom_call.1} parent=23 // pred_check_branch
          %214 = sbr.rel (%p212) target = $region32
        $region31: #{tpu_custom_call.1} parent=23 // pred_region
          %s216 = ssub.s32 128, 128
          %217 = vsyncadd %s208, %s216
          %s218 = smul.addr %s23, 2
          %s219 = smul.addr %s218, 64
          %s220 = scalar_lea.hbm %s2, %s219
          %s222 = sshll.u32 %s211, 4
          %s223 = int_to_ptr.vmem [resolvable:$true] %s222
          %225 = dma.vmem_to_hbm [thread:$0]  %s223, 128, %s220, %s208
        $region32: #{tpu_custom_call.1} parent=23 // pred_fallthru
          _
      $region24: #{tpu_custom_call.1} parent=5 // pred_fallthru
        _
      %p226 = scmp.le.s32.totalorder 2, %s18
      // Predicated region
      $region33: #{tpu_custom_call.1} parent=5 // pred_check
        %p227 = pneg %p226
      $region34: #{tpu_custom_call.1} parent=5 // pred_check_branch
        %229 = sbr.rel (%p227) target = $region36
      $region35: #{tpu_custom_call.1} parent=5 // pred_region
        %s230 = ssub.s32 %s18, 2
        // Predicated region
        $region37: #{tpu_custom_call.1} parent=35 // pred_check
          %p231 = pneg %p73
        $region38: #{tpu_custom_call.1} parent=35 // pred_check_branch
          %233 = sbr.rel (%p231) target = $region40
        $region39: #{tpu_custom_call.1} parent=35 // pred_region
          %s234 = sand.u32 %s58, 1
          %s235 = scalar_lea.sflag [#allocation6], %s234
          %s236 = sand.u32 %s58, 1
          %s237 = smul.addr %s236, 8
          %s238 = scalar_lea.vmem [#allocation7], %s237
          %239 = dma.done %s235, 128
        $region40: #{tpu_custom_call.1} parent=35 // pred_fallthru
          _
      $region36: #{tpu_custom_call.1} parent=5 // pred_fallthru
        _
    $region6: #{tpu_custom_call.1} parent=1 // loop_footer
      %s22 = sadd.s32 1, %s18
    $region7: #{tpu_custom_call.1} parent=1 // loop_footer_branch
      %17 = sbr.rel target = $region3
    $region8: #{tpu_custom_call.1} parent=1 // loop_exit
      _
    %240 = vsyncpa [#allocation5], 1
    %s241 = scalar_lea.sflag [#allocation5], 1
    %242 = vsyncpa %s241, 1
    %243 = vsyncpa [#allocation6], 1
    %s244 = scalar_lea.sflag [#allocation6], 1
    %245 = vsyncpa %s244, 1

</llo_original>
